<compile_context>
chip_gen: v7x
topology: tpu7x:2x2x1
jax: 0.10.0
libtpu: 0.0.40
codegen_flags: <defaults>
</compile_context>

<pallas_src>
import jax
import jax.numpy as jnp
from jax.experimental import pallas as pl
from jax.experimental.pallas import tpu as pltpu


# --------------------------------------------------------------------------- #
# Pallas kernel: VPU shared layer + ReLU  ->  fused (action | value | pad) head
# --------------------------------------------------------------------------- #
def policy_kernel(x_ref, w1_ref, b1_ref, w23_ref, b23_ref, out_ref):
    tb, obs_dim = x_ref.shape                      # static block shape
    hidden = w1_ref.shape[1]
    x = x_ref[...]                                 # (TB, obs_dim) f32

    # Shared layer on the VPU: K = obs_dim is tiny, so unrolled broadcast-FMAs
    # (spare VALU slots) beat an MXU round trip for this shape.
    h = jnp.broadcast_to(b1_ref[...], (tb, hidden))            # (TB, hidden)
    for k in range(obs_dim):                                   # static unroll
        h = h + x[:, k:k + 1] * w1_ref[k:k + 1, :]
    h = jnp.maximum(h, 0.0)                                    # ReLU

    # Fused action+value head: one lane-dense MXU matmul, one unmasked store.
    # Columns beyond act_dim+1 are zero padding and get sliced off outside.
    out_ref[...] = (jnp.dot(h, w23_ref[...],
                            preferred_element_type=jnp.float32)
                    + b23_ref[...]).astype(out_ref.dtype)      # (TB, 128)


def policy_forward(state, params):
    """state: (B, obs_dim) float32. Returns (action_logits (B,act_dim), value (B,1))."""
    w1, b1, w2, b2, w3, b3 = params
    B, obs_dim = state.shape
    hidden = w1.shape[1]
    act_dim = w2.shape[1]

    # --- fuse + lane-pad the two heads to a 128-wide output slab -------------
    out_pad = 128
    w23 = jnp.zeros((hidden, out_pad), jnp.float32)
    w23 = w23.at[:, :act_dim].set(w2).at[:, act_dim:act_dim + 1].set(w3)
    b23 = jnp.zeros((1, out_pad), jnp.float32)
    b23 = b23.at[:, :act_dim].set(b2).at[:, act_dim:act_dim + 1].set(b3)

    # --- batch tiling: pipelined 512-row tiles for large B, one tile if small -
    x = state.astype(jnp.float32)
    if B >= 512:
        tb = 512                                   # fits all VMEM budgets (v5e..v7x)
    else:
        tb = ((B + 7) // 8) * 8                    # sublane-aligned single tile
    bp = ((B + tb - 1) // tb) * tb
    if bp != B:
        x = jnp.pad(x, ((0, bp - B), (0, 0)))
    grid = (bp // tb,)

    flops = 2 * bp * hidden * (obs_dim + out_pad)
    bytes_accessed = 4 * (bp * obs_dim + obs_dim * hidden + hidden
                          + hidden * out_pad + out_pad + bp * out_pad)

    fused = pl.pallas_call(
        policy_kernel,
        out_shape=jax.ShapeDtypeStruct((bp, out_pad), jnp.float32),
        grid=grid,
        in_specs=[
            pl.BlockSpec((tb, obs_dim), lambda i: (i, 0)),      # x: tiled over batch
            pl.BlockSpec((obs_dim, hidden), lambda i: (0, 0)),  # w1 (resident)
            pl.BlockSpec((1, hidden), lambda i: (0, 0)),        # b1 (resident)
            pl.BlockSpec((hidden, out_pad), lambda i: (0, 0)),  # fused head weight
            pl.BlockSpec((1, out_pad), lambda i: (0, 0)),       # fused head bias
        ],
        out_specs=pl.BlockSpec((tb, out_pad), lambda i: (i, 0)),
        compiler_params=pltpu.CompilerParams(
            dimension_semantics=("parallel",)),                 # megacore on v7x
        cost_estimate=pl.CostEstimate(flops=flops, transcendentals=0,
                                      bytes_accessed=bytes_accessed),
    )(x, w1, b1, w23, b23)

    action_logits = fused[:B, :act_dim]
    state_value = fused[:B, act_dim:act_dim + 1]
    return action_logits, state_value


# --------------------------------------------------------------------------- #
# Deterministic parameter initialization (mirrors nn.Linear + xavier_uniform_)
# --------------------------------------------------------------------------- #
def xavier_uniform(key, fan_in, fan_out):
    bound = jnp.sqrt(6.0 / (fan_in + fan_out))
    # stored already transposed: (in_features, out_features)
    return jax.random.uniform(key, (fan_in, fan_out), jnp.float32, -bound, bound)


def linear_bias(key, fan_in, fan_out):
    bound = 1.0 / jnp.sqrt(float(fan_in))
    return jax.random.uniform(key, (1, fan_out), jnp.float32, -bound, bound)


def init_params(key, obs_dim, hidden, act_dim):
    k = jax.random.split(key, 6)
    w1 = xavier_uniform(k[0], obs_dim, hidden)
    b1 = linear_bias(k[1], obs_dim, hidden)
    w2 = xavier_uniform(k[2], hidden, act_dim)
    b2 = linear_bias(k[3], hidden, act_dim)
    w3 = xavier_uniform(k[4], hidden, 1)
    b3 = linear_bias(k[5], hidden, 1)
    return (w1, b1, w2, b2, w3, b3)


def reference_forward(state, params):
    w1, b1, w2, b2, w3, b3 = params
    hi = jax.lax.Precision.HIGHEST
    h = jnp.maximum(jnp.dot(state, w1, precision=hi) + b1, 0.0)
    return (jnp.dot(h, w2, precision=hi) + b2,
            jnp.dot(h, w3, precision=hi) + b3)


if __name__ == "__main__":
    # CartPole-like dimensions: obs_dim=4, action_dim=2, hidden=128, batch=8
    obs_dim, hidden, act_dim, batch = 4, 128, 2, 8

    key = jax.random.PRNGKey(0)
    k_params, k_state = jax.random.split(key)
    params = init_params(k_params, obs_dim, hidden, act_dim)
    state = jax.random.normal(k_state, (batch, obs_dim), jnp.float32)

    action_logits, state_value = jax.block_until_ready(
        policy_forward(state, params))

    ref_logits, ref_value = reference_forward(state, params)
    assert action_logits.shape == (batch, act_dim)
    assert state_value.shape == (batch, 1)
    assert jnp.allclose(action_logits, ref_logits, atol=1e-4, rtol=1e-4)
    assert jnp.allclose(state_value, ref_value, atol=1e-4, rtol=1e-4)

    print("KERNEL_OK")
</pallas_src>

<mosaic_0001>
module attributes {stable_mosaic.version = 11 : i64} {
  func.func @policy_kernel(%arg0: i32, %arg1: memref<8x4xf32, #tpu.memory_space<vmem>>, %arg2: memref<4x128xf32, #tpu.memory_space<vmem>>, %arg3: memref<1x128xf32, #tpu.memory_space<vmem>>, %arg4: memref<128x128xf32, #tpu.memory_space<vmem>>, %arg5: memref<1x128xf32, #tpu.memory_space<vmem>>, %arg6: memref<8x128xf32, #tpu.memory_space<vmem>>) attributes {dimension_semantics = [#tpu.dimension_semantics<parallel>], iteration_bounds = array<i64: 1>, scalar_prefetch = 0 : i64, scratch_operands = 0 : i64, tpu.core_type = #tpu.core_type<tc>, window_params = [{transform_indices = @transform_0, window_bounds = array<i64: 8, 4>}, {pipeline_mode = #tpu.pipeline_mode<synchronous>, transform_indices = @transform_1, window_bounds = array<i64: 4, 128>}, {pipeline_mode = #tpu.pipeline_mode<synchronous>, transform_indices = @transform_2, window_bounds = array<i64: 1, 128>}, {pipeline_mode = #tpu.pipeline_mode<synchronous>, transform_indices = @transform_3, window_bounds = array<i64: 128, 128>}, {pipeline_mode = #tpu.pipeline_mode<synchronous>, transform_indices = @transform_4, window_bounds = array<i64: 1, 128>}, {transform_indices = @transform_5, window_bounds = array<i64: 8, 128>}]} {
    %c0 = arith.constant 0 : index
    %c0_0 = arith.constant 0 : index
    %0 = vector.load %arg1[%c0, %c0_0] : memref<8x4xf32, #tpu.memory_space<vmem>>, vector<8x4xf32>
    %c0_1 = arith.constant 0 : index
    %c0_2 = arith.constant 0 : index
    %1 = vector.load %arg3[%c0_1, %c0_2] : memref<1x128xf32, #tpu.memory_space<vmem>>, vector<1x128xf32>
    %2 = vector.shape_cast %1 : vector<1x128xf32> to vector<1x128xf32>
    %3 = vector.broadcast %2 : vector<1x128xf32> to vector<8x128xf32>
    %4 = vector.extract_strided_slice %0 {offsets = [0, 0], sizes = [8, 1], strides = [1, 1]} : vector<8x4xf32> to vector<8x1xf32>
    %c0_3 = arith.constant 0 : index
    %c0_4 = arith.constant 0 : index
    %5 = vector.load %arg2[%c0_3, %c0_4] : memref<4x128xf32, #tpu.memory_space<vmem>>, vector<1x128xf32>
    %6 = vector.broadcast %4 : vector<8x1xf32> to vector<8x128xf32>
    %7 = vector.broadcast %5 : vector<1x128xf32> to vector<8x128xf32>
    %8 = arith.mulf %6, %7 : vector<8x128xf32>
    %9 = arith.addf %3, %8 : vector<8x128xf32>
    %10 = vector.extract_strided_slice %0 {offsets = [0, 1], sizes = [8, 1], strides = [1, 1]} : vector<8x4xf32> to vector<8x1xf32>
    %c1 = arith.constant 1 : index
    %c0_5 = arith.constant 0 : index
    %11 = vector.load %arg2[%c1, %c0_5] : memref<4x128xf32, #tpu.memory_space<vmem>>, vector<1x128xf32>
    %12 = vector.broadcast %10 : vector<8x1xf32> to vector<8x128xf32>
    %13 = vector.broadcast %11 : vector<1x128xf32> to vector<8x128xf32>
    %14 = arith.mulf %12, %13 : vector<8x128xf32>
    %15 = arith.addf %9, %14 : vector<8x128xf32>
    %16 = vector.extract_strided_slice %0 {offsets = [0, 2], sizes = [8, 1], strides = [1, 1]} : vector<8x4xf32> to vector<8x1xf32>
    %c2 = arith.constant 2 : index
    %c0_6 = arith.constant 0 : index
    %17 = vector.load %arg2[%c2, %c0_6] : memref<4x128xf32, #tpu.memory_space<vmem>>, vector<1x128xf32>
    %18 = vector.broadcast %16 : vector<8x1xf32> to vector<8x128xf32>
    %19 = vector.broadcast %17 : vector<1x128xf32> to vector<8x128xf32>
    %20 = arith.mulf %18, %19 : vector<8x128xf32>
    %21 = arith.addf %15, %20 : vector<8x128xf32>
    %22 = vector.extract_strided_slice %0 {offsets = [0, 3], sizes = [8, 1], strides = [1, 1]} : vector<8x4xf32> to vector<8x1xf32>
    %c3 = arith.constant 3 : index
    %c0_7 = arith.constant 0 : index
    %23 = vector.load %arg2[%c3, %c0_7] : memref<4x128xf32, #tpu.memory_space<vmem>>, vector<1x128xf32>
    %24 = vector.broadcast %22 : vector<8x1xf32> to vector<8x128xf32>
    %25 = vector.broadcast %23 : vector<1x128xf32> to vector<8x128xf32>
    %26 = arith.mulf %24, %25 : vector<8x128xf32>
    %27 = arith.addf %21, %26 : vector<8x128xf32>
    %cst = arith.constant 0.000000e+00 : f32
    %28 = vector.broadcast %cst : f32 to vector<8x128xf32>
    %29 = arith.maximumf %27, %28 : vector<8x128xf32>
    %c0_8 = arith.constant 0 : index
    %c0_9 = arith.constant 0 : index
    %30 = vector.load %arg4[%c0_8, %c0_9] : memref<128x128xf32, #tpu.memory_space<vmem>>, vector<128x128xf32>
    %cst_10 = arith.constant dense<0.000000e+00> : vector<8x128xf32>
    %31 = tpu.matmul %29, %30, %cst_10 {dimension_numbers = #tpu.dot_dimension_numbers<[1], [0], [0], [1], [0, 0, 1, 1], [], []>} : vector<8x128xf32>, vector<128x128xf32>, vector<8x128xf32> -> vector<8x128xf32>
    %c0_11 = arith.constant 0 : index
    %c0_12 = arith.constant 0 : index
    %32 = vector.load %arg5[%c0_11, %c0_12] : memref<1x128xf32, #tpu.memory_space<vmem>>, vector<1x128xf32>
    %33 = vector.broadcast %32 : vector<1x128xf32> to vector<8x128xf32>
    %34 = arith.addf %31, %33 : vector<8x128xf32>
    %c0_13 = arith.constant 0 : index
    %c0_14 = arith.constant 0 : index
    %35 = vector.load %arg6[%c0_13, %c0_14] : memref<8x128xf32, #tpu.memory_space<vmem>>, vector<8x128xf32>
    tpu.vector_store %arg6[%c0_13, %c0_14], %34 {strides = array<i32>} : memref<8x128xf32, #tpu.memory_space<vmem>>, vector<8x128xf32>,
    return
  }
  func.func @transform_0(%arg0: i32) -> (i32, i32) {
    %c0_i32 = arith.constant 0 : i32
    %c0_i32_0 = arith.constant 0 : i32
    return %arg0, %c0_i32 : i32, i32
  }
  func.func @transform_1(%arg0: i32) -> (i32, i32) {
    %c0_i32 = arith.constant 0 : i32
    %c0_i32_0 = arith.constant 0 : i32
    %c0_i32_1 = arith.constant 0 : i32
    return %c0_i32, %c0_i32_0 : i32, i32
  }
  func.func @transform_2(%arg0: i32) -> (i32, i32) {
    %c0_i32 = arith.constant 0 : i32
    %c0_i32_0 = arith.constant 0 : i32
    %c0_i32_1 = arith.constant 0 : i32
    return %c0_i32, %c0_i32_0 : i32, i32
  }
  func.func @transform_3(%arg0: i32) -> (i32, i32) {
    %c0_i32 = arith.constant 0 : i32
    %c0_i32_0 = arith.constant 0 : i32
    %c0_i32_1 = arith.constant 0 : i32
    return %c0_i32, %c0_i32_0 : i32, i32
  }
  func.func @transform_4(%arg0: i32) -> (i32, i32) {
    %c0_i32 = arith.constant 0 : i32
    %c0_i32_0 = arith.constant 0 : i32
    %c0_i32_1 = arith.constant 0 : i32
    return %c0_i32, %c0_i32_0 : i32, i32
  }
  func.func @transform_5(%arg0: i32) -> (i32, i32) {
    %c0_i32 = arith.constant 0 : i32
    %c0_i32_0 = arith.constant 0 : i32
    return %arg0, %c0_i32 : i32, i32
  }
}

</mosaic_0001>

<llo_original>
// kernel: tpu_custom_call.1
$region0: #{tpu_custom_call.1}
  #allocation0 [shape = 'u32[]', space=smem, size = 0x4, offset = 0x4, fixed_abs, tag = 'smem constant byte address 0x4 - core index']
  #allocation1 [shape = 'u32[144,128]{1,0:T(1,128)}', space=vmem, size = 0x12000, scoped, tag = 'internal scratch']
  %s0 = inlined_call_operand.vmem [shape: f32[8,4], index: 0, kind: input, shape index: {}]
  %s1 = inlined_call_operand.vmem [shape: f32[4,128], index: 1, kind: input, shape index: {}]
  %s2 = inlined_call_operand.vmem [shape: f32[1,128], index: 2, kind: input, shape index: {}]
  %s3 = inlined_call_operand.hbm [shape: f32[128,128], index: 3, kind: input, shape index: {}]
  %s4 = inlined_call_operand.vmem [shape: f32[1,128], index: 4, kind: input, shape index: {}]
  %s5 = inlined_call_operand.hbm [shape: f32[8,128], index: 5, kind: output, shape index: {}]
  %s6 = sld [smem:[#allocation0]]
  $region34: #{tpu_custom_call.1} parent=0
    _
  %s8 = ssub.s32 1, %s6
  %s9 = scalar_select 0, %s8, %s6
  $region1: #{tpu_custom_call.1} parent=0
    #allocation2 [shape = 'u8[65536]{0}', space=vmem, size = 0x10000, scoped, tag = 'input window, operand 3, single buffered']
    #allocation3 [shape = 's32[1]{0}', space=sflag, size = 0x4, scoped, tag = 'scoped memory for tpu_custom_call.1']
    #allocation4 [shape = 's32[1]{0}', space=sflag, size = 0x4, scoped, tag = 'scoped memory for tpu_custom_call.1']
    #allocation5 [shape = 'u8[4096]{0}', space=vmem, size = 0x1000, scoped, tag = 'output window, operand 0, single buffered']
    %10 = vsyncpa [#allocation3], 0
    %11 = vsyncpa [#allocation4], 0
    // Predicated region
    $region2: #{tpu_custom_call.1} parent=1 // pred_check
      _
    $region3: #{tpu_custom_call.1} parent=1 // pred_check_branch
      %13 = sbr.rel (0) target = $region5
    $region4: #{tpu_custom_call.1} parent=1 // pred_region
      _
    $region5: #{tpu_custom_call.1} parent=1 // pred_fallthru
      _
    // Predicated region
    $region6: #{tpu_custom_call.1} parent=1 // pred_check
      _
    $region7: #{tpu_custom_call.1} parent=1 // pred_check_branch
      %15 = sbr.rel (0) target = $region9
    $region8: #{tpu_custom_call.1} parent=1 // pred_region
      _
    $region9: #{tpu_custom_call.1} parent=1 // pred_fallthru
      _
    // Predicated region
    $region10: #{tpu_custom_call.1} parent=1 // pred_check
      _
    $region11: #{tpu_custom_call.1} parent=1 // pred_check_branch
      %17 = sbr.rel (0) target = $region13
    $region12: #{tpu_custom_call.1} parent=1 // pred_region
      _
    $region13: #{tpu_custom_call.1} parent=1 // pred_fallthru
      _
    // Predicated region
    $region14: #{tpu_custom_call.1} parent=1 // pred_check
      _
    $region15: #{tpu_custom_call.1} parent=1 // pred_check_branch
      %19 = sbr.rel (0) target = $region17
    $region16: #{tpu_custom_call.1} parent=1 // pred_region
      %s21 = ssub.s32 2048, 2048
      %22 = vsyncadd [#allocation3], %s21
      %s23 = sshll.u32 [#allocation2], 4
      %s24 = int_to_ptr.vmem [resolvable:$true] %s23
      %29 = dma.hbm_to_vmem [thread:$0]  %s3, 2048, %s24, [#allocation3], 128, 128, 8
    $region17: #{tpu_custom_call.1} parent=1 // pred_fallthru
      _
    // Predicated region
    $region18: #{tpu_custom_call.1} parent=1 // pred_check
      _
    $region19: #{tpu_custom_call.1} parent=1 // pred_check_branch
      %31 = sbr.rel (0) target = $region21
    $region20: #{tpu_custom_call.1} parent=1 // pred_region
      _
    $region21: #{tpu_custom_call.1} parent=1 // pred_fallthru
      _
    // Predicated region
    $region22: #{tpu_custom_call.1} parent=1 // pred_check
      _
    $region23: #{tpu_custom_call.1} parent=1 // pred_check_branch
      %33 = sbr.rel (0) target = $region25
    $region24: #{tpu_custom_call.1} parent=1 // pred_region
      %34 = dma.done [#allocation3], 2048
    $region25: #{tpu_custom_call.1} parent=1 // pred_fallthru
      _
    %v35 = vld [vmem:[%s0] sm:$0xff]
    %v36 = vld [vmem:[%s2] sm:$0x1]
    %v38 = vlaneseq
    %v39 = vshrl.u32 %v38, 7
    %v40 = vsub.s32 0, %v39
    %v41 = vrot.slane %v36, %v40
    %v43 = vld [vmem:[%s1] sm:$0x1]
    %45 = vset.pattern.permute.xlu0 0
    %46 = vperm.xlu0 %45, %v35
    %v47 = vpop.permute.xlu0 %46
    %v49 = vlaneseq
    %v50 = vshrl.u32 %v49, 7
    %v51 = vsub.s32 0, %v50
    %v52 = vrot.slane %v43, %v51
    %v53 = vmul.f32 %v47, %v52
    %v54 = vadd.f32 %v41, %v53
    %v55 = vld [vmem:[%s1 + $0x1] sm:$0x1]
    %56 = vset.pattern.permute.xlu0 1
    %57 = vperm.xlu0 %56, %v35
    %v58 = vpop.permute.xlu0 %57
    %v60 = vlaneseq
    %v61 = vshrl.u32 %v60, 7
    %v62 = vsub.s32 0, %v61
    %v63 = vrot.slane %v55, %v62
    %v64 = vmul.f32 %v58, %v63
    %v65 = vadd.f32 %v54, %v64
    %v66 = vld [vmem:[%s1 + $0x2] sm:$0x1]
    %67 = vset.pattern.permute.xlu0 2
    %68 = vperm.xlu0 %67, %v35
    %v69 = vpop.permute.xlu0 %68
    %v71 = vlaneseq
    %v72 = vshrl.u32 %v71, 7
    %v73 = vsub.s32 0, %v72
    %v74 = vrot.slane %v66, %v73
    %v75 = vmul.f32 %v69, %v74
    %v76 = vadd.f32 %v65, %v75
    %v77 = vld [vmem:[%s1 + $0x3] sm:$0x1]
    %78 = vset.pattern.permute.xlu0 3
    %79 = vperm.xlu0 %78, %v35
    %v80 = vpop.permute.xlu0 %79
    %v82 = vlaneseq
    %v83 = vshrl.u32 %v82, 7
    %v84 = vsub.s32 0, %v83
    %v85 = vrot.slane %v77, %v84
    %v86 = vmul.f32 %v80, %v85
    %v87 = vadd.f32 %v76, %v86
    %v88 = vmax.f32 %v87, 0.0
    %v89 = vld [vmem:[#allocation2] sm:$0xff]
    %v90 = vld [vmem:[#allocation2 + $0x8] sm:$0xff]
    %v91 = vld [vmem:[#allocation2 + $0x10] sm:$0xff]
    %v92 = vld [vmem:[#allocation2 + $0x18] sm:$0xff]
    %v93 = vld [vmem:[#allocation2 + $0x20] sm:$0xff]
    %v94 = vld [vmem:[#allocation2 + $0x28] sm:$0xff]
    %v95 = vld [vmem:[#allocation2 + $0x30] sm:$0xff]
    %v96 = vld [vmem:[#allocation2 + $0x38] sm:$0xff]
    %v97 = vld [vmem:[#allocation2 + $0x40] sm:$0xff]
    %v98 = vld [vmem:[#allocation2 + $0x48] sm:$0xff]
    %v99 = vld [vmem:[#allocation2 + $0x50] sm:$0xff]
    %v100 = vld [vmem:[#allocation2 + $0x58] sm:$0xff]
    %v101 = vld [vmem:[#allocation2 + $0x60] sm:$0xff]
    %v102 = vld [vmem:[#allocation2 + $0x68] sm:$0xff]
    %v103 = vld [vmem:[#allocation2 + $0x70] sm:$0xff]
    %v104 = vld [vmem:[#allocation2 + $0x78] sm:$0xff]
    %v105 = vld [vmem:[%s4] sm:$0x1]
    %v107 = vlaneseq
    %v108 = vshrl.u32 %v107, 7
    %v109 = vsub.s32 0, %v108
    %v110 = vrot.slane %v105, %v109
    %112 = vmatprep.subr.mxu0 0.0
    %113 = vmatpush1.msra.mxu0 %v89
    %114 = vmatprep.subr.mxu0 0.0
    %115 = vmatpush1.msra.mxu0 %v90
    %116 = vmatprep.subr.mxu0 0.0
    %117 = vmatpush1.msra.mxu0 %v91
    %118 = vmatprep.subr.mxu0 0.0
    %119 = vmatpush1.msra.mxu0 %v92
    %120 = vmatprep.subr.mxu0 0.0
    %121 = vmatpush1.msra.mxu0 %v93
    %122 = vmatprep.subr.mxu0 0.0
    %123 = vmatpush1.msra.mxu0 %v94
    %124 = vmatprep.subr.mxu0 0.0
    %125 = vmatpush1.msra.mxu0 %v95
    %126 = vmatprep.subr.mxu0 0.0
    %127 = vmatpush1.msra.mxu0 %v96
    %128 = vmatprep.subr.mxu0 0.0
    %129 = vmatpush1.msra.mxu0 %v97
    %130 = vmatprep.subr.mxu0 0.0
    %131 = vmatpush1.msra.mxu0 %v98
    %132 = vmatprep.subr.mxu0 0.0
    %133 = vmatpush1.msra.mxu0 %v99
    %134 = vmatprep.subr.mxu0 0.0
    %135 = vmatpush1.msra.mxu0 %v100
    %136 = vmatprep.subr.mxu0 0.0
    %137 = vmatpush1.msra.mxu0 %v101
    %138 = vmatprep.subr.mxu0 0.0
    %139 = vmatpush1.msra.mxu0 %v102
    %140 = vmatprep.subr.mxu0 0.0
    %141 = vmatpush1.msra.mxu0 %v103
    %142 = vmatprep.subr.mxu0 0.0
    %143 = vmatpush1.msra.mxu0 %v104
    %144 = vmatprep.subr.mxu0 0.0
    %145 = vmatpush1.msra.mxu0 0.0
    %146 = vmatprep.subr.mxu0 0.0
    %147 = vmatpush1.msra.mxu0 0.0
    %148 = vmatprep.subr.mxu0 0.0
    %149 = vmatpush1.msra.mxu0 0.0
    %150 = vmatprep.subr.mxu0 0.0
    %151 = vmatpush1.msra.mxu0 0.0
    %152 = vmatprep.subr.mxu0 0.0
    %153 = vmatpush1.msra.mxu0 0.0
    %154 = vmatprep.subr.mxu0 0.0
    %155 = vmatpush1.msra.mxu0 0.0
    %156 = vmatprep.subr.mxu0 0.0
    %157 = vmatpush1.msra.mxu0 0.0
    %158 = vmatprep.subr.mxu0 0.0
    %159 = vmatpush1.msra.mxu0 0.0
    %160 = vmatprep.subr.mxu0 0.0
    %161 = vmatpush1.msra.mxu0 0.0
    %162 = vmatprep.subr.mxu0 0.0
    %163 = vmatpush1.msra.mxu0 0.0
    %164 = vmatprep.subr.mxu0 0.0
    %165 = vmatpush1.msra.mxu0 0.0
    %166 = vmatprep.subr.mxu0 0.0
    %167 = vmatpush1.msra.mxu0 0.0
    %168 = vmatprep.subr.mxu0 0.0
    %169 = vmatpush1.msra.mxu0 0.0
    %170 = vmatprep.subr.mxu0 0.0
    %171 = vmatpush1.msra.mxu0 0.0
    %172 = vmatprep.subr.mxu0 0.0
    %173 = vmatpush1.msra.mxu0 0.0
    %174 = vmatprep.subr.mxu0 0.0
    %175 = vmatpush1.msra.mxu0 0.0
    %176 = vmatprep.mubr.f32.mxu0 0.0
    %177 = vmatmul.mubr.f32.gmra.mrb[0].mxu0 %v88
    %v178 = vpop.f32.mrb[0].mxu0
    %v179 = vadd.f32 %v110, %v178
    %v180 = vpop.f32.mrb[0].mxu0
    %181 = vdwg.mxu0
    %182 = vst [vmem:[#allocation5] sm:$0xff] %v179
    // Predicated region
    $region26: #{tpu_custom_call.1} parent=1 // pred_check
      _
    $region27: #{tpu_custom_call.1} parent=1 // pred_check_branch
      %184 = sbr.rel (0) target = $region29
    $region28: #{tpu_custom_call.1} parent=1 // pred_region
      %s186 = ssub.s32 128, 128
      %187 = vsyncadd [#allocation4], %s186
      %s189 = sshll.u32 [#allocation5], 4
      %s190 = int_to_ptr.vmem [resolvable:$true] %s189
      %192 = dma.vmem_to_hbm [thread:$0]  %s190, 128, %s5, [#allocation4]
    $region29: #{tpu_custom_call.1} parent=1 // pred_fallthru
      _
    // Predicated region
    $region30: #{tpu_custom_call.1} parent=1 // pred_check
      _
    $region31: #{tpu_custom_call.1} parent=1 // pred_check_branch
      %194 = sbr.rel (0) target = $region33
    $region32: #{tpu_custom_call.1} parent=1 // pred_region
      %195 = dma.done [#allocation4], 128
    $region33: #{tpu_custom_call.1} parent=1 // pred_fallthru
      _
    %196 = vsyncpa [#allocation3], 1
    %197 = vsyncpa [#allocation4], 1

</llo_original>
